<compile_context>
chip_gen: v7x
topology: tpu7x:2x2x1
jax: 0.10.0
libtpu: 0.0.40
codegen_flags: <defaults>
</compile_context>

<pallas_src>
import jax
import jax.numpy as jnp
from jax import lax
from jax.experimental import pallas as pl
from jax.experimental.pallas import tpu as pltpu


def _head_kernel(x_ref, w_ref, o_ref):
    # x_ref: (1, T, C)     current batch element
    # w_ref: (C, 3*Hp)     fused [Wv | Wk | Wq] weights, each 128-lane padded
    # o_ref: (1, T, Hp)    lane-dense padded output (first H cols are real)
    x = x_ref[0]                       # (T, C)
    w = w_ref[...]                     # (C, 3*Hp)
    T, C = x.shape
    Hp = o_ref.shape[-1]

    # Fused projection: one MXU pass for v, k, q.
    proj = jnp.dot(x, w, preferred_element_type=jnp.float32)   # (T, 3*Hp)
    v = proj[:, :Hp]                   # 128-aligned blocks -> no lane shuffles
    k = proj[:, Hp:2 * Hp]
    q = proj[:, 2 * Hp:]

    # Fold the C**-0.5 scale into q (note: scale uses C = n_embd, as in the
    # reference module, not head_size).
    scale = jnp.float32(C) ** jnp.float32(-0.5)
    q = q * scale

    # Attention scores: contract last dims directly (no explicit k.T).
    wei = lax.dot_general(
        q, k,
        dimension_numbers=(((1,), (1,)), ((), ())),
        preferred_element_type=jnp.float32,
    )                                   # (T, T)

    # Causal mask: tril == 0 -> -inf  (padded H columns are zero, so they do
    # not perturb the scores).
    row = lax.broadcasted_iota(jnp.int32, (T, T), 0)
    col = lax.broadcasted_iota(jnp.int32, (T, T), 1)
    wei = jnp.where(col <= row, wei, -jnp.inf)

    # Numerically-stable softmax along the last axis.
    m = jnp.max(wei, axis=-1, keepdims=True)
    e = jnp.exp(wei - m)
    denom = jnp.sum(e, axis=-1, keepdims=True)
    p = e * pl.reciprocal(denom, approx=True)   # EUP vrcp slot

    # dropout: eval-mode identity (see TODO above)

    out = jnp.dot(p, v, preferred_element_type=jnp.float32)    # (T, Hp)
    o_ref[0] = out.astype(o_ref.dtype)


def head_forward(x, wk, wq, wv):
    """x: (B, T, C) float32; wk/wq/wv: (C, H) float32  ->  (B, T, H) float32."""
    B, T, C = x.shape
    H = wk.shape[1]
    # Pad each head projection to a full 128-lane block so every slice in the
    # kernel is lane-aligned and the output store is unmasked/lane-dense.
    Hp = ((H + 127) // 128) * 128

    def _pad(w):
        return jnp.pad(w, ((0, 0), (0, Hp - H)))

    # Order [v, k, q] so v (used last in p @ v) sits in the first aligned block.
    w_fused = jnp.concatenate([_pad(wv), _pad(wk), _pad(wq)], axis=1)  # (C, 3*Hp)

    out_padded = pl.pallas_call(
        _head_kernel,
        out_shape=jax.ShapeDtypeStruct((B, T, Hp), jnp.float32),
        grid_spec=pltpu.PrefetchScalarGridSpec(
            num_scalar_prefetch=0,
            grid=(B,),
            in_specs=[
                pl.BlockSpec((1, T, C), lambda b: (b, 0, 0)),
                pl.BlockSpec((C, 3 * Hp), lambda b: (0, 0)),
            ],
            out_specs=pl.BlockSpec((1, T, Hp), lambda b: (b, 0, 0)),
        ),
        compiler_params=pltpu.CompilerParams(
            dimension_semantics=("parallel",),
        ),
    )(x, w_fused)

    # Drop the zero-padded lanes (layout plumbing only).
    return out_padded[..., :H]


def _reference(x, wk, wq, wv):
    """Pure-JAX reference mirroring the PyTorch forward (eval mode)."""
    B, T, C = x.shape
    k = x @ wk
    q = x @ wq
    v = x @ wv
    wei = jnp.einsum("btd,bsd->bts", q, k) * (C ** -0.5)
    mask = jnp.tril(jnp.ones((T, T), dtype=bool))
    wei = jnp.where(mask, wei, -jnp.inf)
    wei = jax.nn.softmax(wei, axis=-1)
    return jnp.einsum("bts,bsd->btd", wei, v)


if __name__ == "__main__":
    # config: n_embd=32, n_head=4 -> head_size=8, block_size=8
    B, T = 2, 8
    n_embd, n_head = 32, 4
    head_size = n_embd // n_head

    key = jax.random.PRNGKey(0)
    kx, kk, kq, kv = jax.random.split(key, 4)
    x = jax.random.normal(kx, (B, T, n_embd), dtype=jnp.float32)
    # deterministic "Linear(n_embd, head_size, bias=False)" weights, stored
    # as (in, out) so the kernel does x @ W
    wk = jax.random.normal(kk, (n_embd, head_size), dtype=jnp.float32) * 0.1
    wq = jax.random.normal(kq, (n_embd, head_size), dtype=jnp.float32) * 0.1
    wv = jax.random.normal(kv, (n_embd, head_size), dtype=jnp.float32) * 0.1

    out = head_forward(x, wk, wq, wv)
    out = jax.block_until_ready(out)

    ref = _reference(x, wk, wq, wv)
    assert out.shape == (B, T, head_size)
    # slightly looser tolerance: approx reciprocal in the softmax denominator
    assert jnp.allclose(out, ref, atol=2e-3, rtol=2e-3), "mismatch vs reference"

    print("KERNEL_OK")
</pallas_src>

<mosaic_0001>
module attributes {stable_mosaic.version = 11 : i64} {
  func.func @_head_kernel(%arg0: i32, %arg1: memref<1x8x32xf32, #tpu.memory_space<vmem>>, %arg2: memref<32x384xf32, #tpu.memory_space<vmem>>, %arg3: memref<1x8x128xf32, #tpu.memory_space<vmem>>) attributes {dimension_semantics = [#tpu.dimension_semantics<parallel>], iteration_bounds = array<i64: 2>, scalar_prefetch = 0 : i64, scratch_operands = 0 : i64, tpu.core_type = #tpu.core_type<tc>, window_params = [{transform_indices = @transform_0, window_bounds = array<i64: 1, 8, 32>}, {pipeline_mode = #tpu.pipeline_mode<synchronous>, transform_indices = @transform_1, window_bounds = array<i64: 32, 384>}, {transform_indices = @transform_2, window_bounds = array<i64: 1, 8, 128>}]} {
    %c0 = arith.constant 0 : index
    %c0_0 = arith.constant 0 : index
    %c0_1 = arith.constant 0 : index
    %0 = vector.load %arg1[%c0, %c0_0, %c0_1] : memref<1x8x32xf32, #tpu.memory_space<vmem>>, vector<1x8x32xf32>
    %1 = vector.shape_cast %0 : vector<1x8x32xf32> to vector<8x32xf32>
    %c0_2 = arith.constant 0 : index
    %c0_3 = arith.constant 0 : index
    %2 = vector.load %arg2[%c0_2, %c0_3] : memref<32x384xf32, #tpu.memory_space<vmem>>, vector<32x384xf32>
    %cst = arith.constant dense<0.000000e+00> : vector<8x384xf32>
    %3 = tpu.matmul %1, %2, %cst {dimension_numbers = #tpu.dot_dimension_numbers<[1], [0], [0], [1], [0, 0, 1, 1], [], []>} : vector<8x32xf32>, vector<32x384xf32>, vector<8x384xf32> -> vector<8x384xf32>
    %4 = vector.extract_strided_slice %3 {offsets = [0, 0], sizes = [8, 128], strides = [1, 1]} : vector<8x384xf32> to vector<8x128xf32>
    %5 = vector.extract_strided_slice %3 {offsets = [0, 128], sizes = [8, 128], strides = [1, 1]} : vector<8x384xf32> to vector<8x128xf32>
    %6 = vector.extract_strided_slice %3 {offsets = [0, 256], sizes = [8, 128], strides = [1, 1]} : vector<8x384xf32> to vector<8x128xf32>
    %cst_4 = arith.constant 3.200000e+01 : f32
    %cst_5 = arith.constant -5.000000e-01 : f32
    %7 = math.powf %cst_4, %cst_5 : f32
    %8 = vector.broadcast %7 : f32 to vector<8x128xf32>
    %9 = arith.mulf %6, %8 : vector<8x128xf32>
    %cst_6 = arith.constant dense<0.000000e+00> : vector<8x8xf32>
    %10 = tpu.matmul %9, %5, %cst_6 {dimension_numbers = #tpu.dot_dimension_numbers<[1], [1], [0], [0], [0, 0, 1, 0], [], []>} : vector<8x128xf32>, vector<8x128xf32>, vector<8x8xf32> -> vector<8x8xf32>
    %11 = tpu.iota {dimensions = array<i32: 0>} : vector<8x8xi32>
    %12 = tpu.iota {dimensions = array<i32: 1>} : vector<8x8xi32>
    %13 = arith.cmpi sle, %12, %11 : vector<8x8xi32>
    %cst_7 = arith.constant 0xFF800000 : f32
    %14 = vector.broadcast %cst_7 : f32 to vector<8x8xf32>
    %15 = arith.select %13, %10, %14 : vector<8x8xi1>, vector<8x8xf32>
    %cst_8 = arith.constant dense<0xFF800000> : vector<8xf32>
    %16 = vector.multi_reduction <maximumf>, %15, %cst_8 [1] : vector<8x8xf32> to vector<8xf32>
    %17 = vector.shape_cast %16 : vector<8xf32> to vector<8x1xf32>
    %18 = vector.broadcast %17 : vector<8x1xf32> to vector<8x8xf32>
    %19 = arith.subf %15, %18 : vector<8x8xf32>
    %20 = math.exp %19 : vector<8x8xf32>
    %cst_9 = arith.constant dense<0.000000e+00> : vector<8xf32>
    %21 = vector.multi_reduction <add>, %20, %cst_9 [1] : vector<8x8xf32> to vector<8xf32>
    %22 = vector.shape_cast %21 : vector<8xf32> to vector<8x1xf32>
    %23 = tpu.reciprocal %22 {approx = true} : vector<8x1xf32> -> vector<8x1xf32>
    %24 = vector.broadcast %23 : vector<8x1xf32> to vector<8x8xf32>
    %25 = arith.mulf %20, %24 : vector<8x8xf32>
    %cst_10 = arith.constant dense<0.000000e+00> : vector<8x128xf32>
    %26 = tpu.matmul %25, %4, %cst_10 {dimension_numbers = #tpu.dot_dimension_numbers<[1], [0], [0], [1], [0, 0, 1, 1], [], []>} : vector<8x8xf32>, vector<8x128xf32>, vector<8x128xf32> -> vector<8x128xf32>
    %c0_11 = arith.constant 0 : index
    %c0_12 = arith.constant 0 : index
    %c0_13 = arith.constant 0 : index
    %27 = vector.load %arg3[%c0_11, %c0_12, %c0_13] : memref<1x8x128xf32, #tpu.memory_space<vmem>>, vector<1x8x128xf32>
    %28 = vector.shape_cast %27 : vector<1x8x128xf32> to vector<8x128xf32>
    %29 = vector.shape_cast %26 : vector<8x128xf32> to vector<1x8x128xf32>
    tpu.vector_store %arg3[%c0_11, %c0_12, %c0_13], %29 {strides = array<i32>} : memref<1x8x128xf32, #tpu.memory_space<vmem>>, vector<1x8x128xf32>,
    return
  }
  func.func @transform_0(%arg0: i32) -> (i32, i32, i32) {
    %c0_i32 = arith.constant 0 : i32
    %c0_i32_0 = arith.constant 0 : i32
    %c0_i32_1 = arith.constant 0 : i32
    return %arg0, %c0_i32, %c0_i32_0 : i32, i32, i32
  }
  func.func @transform_1(%arg0: i32) -> (i32, i32) {
    %c0_i32 = arith.constant 0 : i32
    %c0_i32_0 = arith.constant 0 : i32
    %c0_i32_1 = arith.constant 0 : i32
    return %c0_i32, %c0_i32_0 : i32, i32
  }
  func.func @transform_2(%arg0: i32) -> (i32, i32, i32) {
    %c0_i32 = arith.constant 0 : i32
    %c0_i32_0 = arith.constant 0 : i32
    %c0_i32_1 = arith.constant 0 : i32
    return %arg0, %c0_i32, %c0_i32_0 : i32, i32, i32
  }
}

</mosaic_0001>

<llo_original>
// kernel: tpu_custom_call.1
$region0: #{tpu_custom_call.1}
  #allocation0 [shape = 'u32[]', space=smem, size = 0x4, offset = 0x4, fixed_abs, tag = 'smem constant byte address 0x4 - core index']
  #allocation1 [shape = 'u32[144,128]{1,0:T(1,128)}', space=vmem, size = 0x12000, scoped, tag = 'internal scratch']
  %s0 = inlined_call_operand.hbm [shape: f32[2,8,32], index: 0, kind: input, shape index: {}]
  %s1 = inlined_call_operand.hbm [shape: f32[32,384], index: 1, kind: input, shape index: {}]
  %s2 = inlined_call_operand.hbm [shape: f32[2,8,128], index: 2, kind: output, shape index: {}]
  %s3 = sld [smem:[#allocation0]]
  $region49: #{tpu_custom_call.1} parent=0
    _
  %s5 = ssub.s32 1, %s3
  %s6 = scalar_select 0, %s5, %s3
  $region1: #{tpu_custom_call.1} parent=0
    #allocation2 [shape = 'u8[8192]{0}', space=vmem, size = 0x2000, scoped, tag = 'input window, operand 0']
    #allocation3 [shape = 's32[2]{0}', space=sflag, size = 0x8, scoped, tag = 'scoped memory for tpu_custom_call.1']
    #allocation4 [shape = 's32[2]{0}', space=sflag, size = 0x8, scoped, tag = 'scoped memory for tpu_custom_call.1']
    #allocation5 [shape = 'u8[49152]{0}', space=vmem, size = 0xc000, scoped, tag = 'input window, operand 1, single buffered']
    #allocation6 [shape = 's32[1]{0}', space=sflag, size = 0x4, scoped, tag = 'scoped memory for tpu_custom_call.1']
    #allocation7 [shape = 'u8[8192]{0}', space=vmem, size = 0x2000, scoped, tag = 'output window, operand 0']
    %7 = vsyncpa [#allocation3], 0
    %s8 = scalar_lea.sflag [#allocation3], 1
    %9 = vsyncpa %s8, 0
    %10 = vsyncpa [#allocation6], 0
    %11 = vsyncpa [#allocation4], 0
    %s12 = scalar_lea.sflag [#allocation4], 1
    %13 = vsyncpa %s12, 0
    loop: start=0, step=1, limit=4
    $region2: #{tpu_custom_call.1} parent=1 // loop_pre_header
      _
    $region3: #{tpu_custom_call.1} parent=1 // loop_header
      %s15 = sphi 0, %s19
      %p16 = scmp.ge.s32.totalorder %s15, 4
      %s25 = sphi 0, %s27
      %s28 = sphi 0, %s25
      %s29 = sphi 0, %s28
      %s45 = sphi 0, %s29
      %s49 = sphi 0, %s49
      %s51 = sphi 0, %s49
      %s52 = sphi 0, %s51
      %s66 = sphi 0, %s52
      %s72 = sphi 0, %s74
      %s75 = sphi 0, %s72
      %s76 = sphi 0, %s75
      %s92 = sphi 0, %s76
    $region4: #{tpu_custom_call.1} parent=1 // loop_header_branch
      %18 = sbr.rel (%p16) target = $region8
    $region5: #{tpu_custom_call.1} parent=1 // loop_body
      %s20 = ssub.s32 %s15, 1
      %s21 = ssub.s32 %s15, 2
      %s22 = sadd.s32 %s15, 1
      %s23 = ssub.s32 %s15, %s22
      %p24 = scmp.eq.s32.totalorder %s23, 0
      %s26 = sadd.s32 %s25, 1
      %s27 = scalar_select %p24, %s25, %s26
      %p30 = pneg %p24
      %p31 = scmp.eq.s32.totalorder %s15, 1
      %p32 = por %p30, %p31
      %p33 = scmp.ne.s32.totalorder %s25, %s28
      %p34 = scmp.eq.s32.totalorder %s15, 0
      %p35 = por %p33, %p34
      %p36 = scmp.ne.s32.totalorder %s25, %s28
      %p37 = scmp.eq.s32.totalorder %s20, 1
      %p38 = por %p36, %p37
      %p39 = scmp.ne.s32.totalorder %s28, %s29
      %p40 = scmp.eq.s32.totalorder %s20, 0
      %p41 = por %p39, %p40
      %p42 = scmp.ne.s32.totalorder %s28, %s29
      %p43 = scmp.eq.s32.totalorder %s21, 1
      %p44 = por %p42, %p43
      %p46 = scmp.ne.s32.totalorder %s29, %s45
      %p47 = scmp.eq.s32.totalorder %s21, 0
      %p48 = por %p46, %p47
      %s50 = sadd.s32 %s49, 1
      %p53 = scmp.eq.s32.totalorder %s15, 1
      %p54 = scmp.ne.s32.totalorder %s49, %s51
      %p55 = scmp.eq.s32.totalorder %s15, 0
      %p56 = por %p54, %p55
      %p57 = scmp.ne.s32.totalorder %s49, %s51
      %p58 = scmp.eq.s32.totalorder %s20, 1
      %p59 = por %p57, %p58
      %p60 = scmp.ne.s32.totalorder %s51, %s52
      %p61 = scmp.eq.s32.totalorder %s20, 0
      %p62 = por %p60, %p61
      %p63 = scmp.ne.s32.totalorder %s51, %s52
      %p64 = scmp.eq.s32.totalorder %s21, 1
      %p65 = por %p63, %p64
      %p67 = scmp.ne.s32.totalorder %s52, %s66
      %p68 = scmp.eq.s32.totalorder %s21, 0
      %p69 = por %p67, %p68
      %s70 = ssub.s32 %s15, %s22
      %p71 = scmp.eq.s32.totalorder %s70, 0
      %s73 = sadd.s32 %s72, 1
      %s74 = scalar_select %p71, %s72, %s73
      %p77 = pneg %p71
      %p78 = scmp.eq.s32.totalorder %s15, 1
      %p79 = por %p77, %p78
      %p80 = scmp.ne.s32.totalorder %s72, %s75
      %p81 = scmp.eq.s32.totalorder %s15, 0
      %p82 = por %p80, %p81
      %p83 = scmp.ne.s32.totalorder %s72, %s75
      %p84 = scmp.eq.s32.totalorder %s20, 1
      %p85 = por %p83, %p84
      %p86 = scmp.ne.s32.totalorder %s75, %s76
      %p87 = scmp.eq.s32.totalorder %s20, 0
      %p88 = por %p86, %p87
      %p89 = scmp.ne.s32.totalorder %s75, %s76
      %p90 = scmp.eq.s32.totalorder %s21, 1
      %p91 = por %p89, %p90
      %p93 = scmp.ne.s32.totalorder %s76, %s92
      %p94 = scmp.eq.s32.totalorder %s21, 0
      %p95 = por %p93, %p94
      %p96 = scmp.le.s32.totalorder 1, %s15
      %p97 = scmp.lt.s32.totalorder %s15, 3
      %p98 = pnand %p96, %p97
      %p99 = pneg %p98
      // Predicated region
      $region9: #{tpu_custom_call.1} parent=5 // pred_check
        _
      $region10: #{tpu_custom_call.1} parent=5 // pred_check_branch
        %101 = sbr.rel (%p98) target = $region12
      $region11: #{tpu_custom_call.1} parent=5 // pred_region
        %s102 = ssub.s32 %s15, 1
        // Predicated region
        $region13: #{tpu_custom_call.1} parent=11 // pred_check
          %p103 = pneg %p62
        $region14: #{tpu_custom_call.1} parent=11 // pred_check_branch
          %105 = sbr.rel (%p103) target = $region16
        $region15: #{tpu_custom_call.1} parent=11 // pred_region
          %s107 = ssub.s32 1536, 1536
          %108 = vsyncadd [#allocation6], %s107
          %s109 = sshll.u32 [#allocation5], 4
          %s110 = int_to_ptr.vmem [resolvable:$true] %s109
          %115 = dma.hbm_to_vmem [thread:$0]  %s1, 1536, %s110, [#allocation6], 384, 384, 24
        $region16: #{tpu_custom_call.1} parent=11 // pred_fallthru
          _
      $region12: #{tpu_custom_call.1} parent=5 // pred_fallthru
        _
      %p116 = scmp.lt.s32.totalorder %s15, 2
      // Predicated region
      $region17: #{tpu_custom_call.1} parent=5 // pred_check
        %p117 = pneg %p116
      $region18: #{tpu_custom_call.1} parent=5 // pred_check_branch
        %119 = sbr.rel (%p117) target = $region20
      $region19: #{tpu_custom_call.1} parent=5 // pred_region
        // Predicated region
        $region21: #{tpu_custom_call.1} parent=19 // pred_check
          %p120 = pneg %p35
        $region22: #{tpu_custom_call.1} parent=19 // pred_check_branch
          %122 = sbr.rel (%p120) target = $region24
        $region23: #{tpu_custom_call.1} parent=19 // pred_region
          %s123 = sand.u32 %s25, 1
          %s124 = scalar_lea.sflag [#allocation3], %s123
          %s125 = sand.u32 %s25, 1
          %s126 = smul.addr %s125, 8
          %s127 = scalar_lea.vmem [#allocation2], %s126
          %s129 = ssub.s32 128, 128
          %130 = vsyncadd %s124, %s129
          %s131 = smul.addr %s15, 128
          %s132 = scalar_lea.hbm %s0, %s131
          %s134 = sshll.u32 %s127, 4
          %s135 = int_to_ptr.vmem [resolvable:$true] %s134
          %137 = dma.hbm_to_vmem [thread:$0]  %s132, 128, %s135, %s124
        $region24: #{tpu_custom_call.1} parent=19 // pred_fallthru
          _
      $region20: #{tpu_custom_call.1} parent=5 // pred_fallthru
        _
      %p138 = scmp.le.s32.totalorder 1, %s15
      %p139 = scmp.lt.s32.totalorder %s15, 3
      %p140 = pnand %p138, %p139
      %p141 = pneg %p140
      // Predicated region
      $region25: #{tpu_custom_call.1} parent=5 // pred_check
        _
      $region26: #{tpu_custom_call.1} parent=5 // pred_check_branch
        %143 = sbr.rel (%p140) target = $region28
      $region27: #{tpu_custom_call.1} parent=5 // pred_region
        %s144 = ssub.s32 %s15, 1
        %s145 = sand.u32 %s28, 1
        %s146 = scalar_lea.sflag [#allocation3], %s145
        %s147 = sand.u32 %s28, 1
        %s148 = smul.addr %s147, 8
        %s149 = scalar_lea.vmem [#allocation2], %s148
        // Predicated region
        $region29: #{tpu_custom_call.1} parent=27 // pred_check
          %p150 = pneg %p41
        $region30: #{tpu_custom_call.1} parent=27 // pred_check_branch
          %152 = sbr.rel (%p150) target = $region32
        $region31: #{tpu_custom_call.1} parent=27 // pred_region
          %153 = dma.done %s146, 128
        $region32: #{tpu_custom_call.1} parent=27 // pred_fallthru
          _
        // Predicated region
        $region33: #{tpu_custom_call.1} parent=27 // pred_check
          %p154 = pneg %p62
        $region34: #{tpu_custom_call.1} parent=27 // pred_check_branch
          %156 = sbr.rel (%p154) target = $region36
        $region35: #{tpu_custom_call.1} parent=27 // pred_region
          %157 = dma.done [#allocation6], 1536
        $region36: #{tpu_custom_call.1} parent=27 // pred_fallthru
          _
        %s158 = sand.u32 %s28, 1
        %s159 = scalar_lea.sflag [#allocation3], %s158
        %s160 = sand.u32 %s28, 1
        %s161 = smul.addr %s160, 8
        %s162 = scalar_lea.vmem [#allocation2], %s161
        %p163 = pneg %p41
        %p164 = pneg %p38
        %p165 = pneg %p62
        %p166 = pneg %p59
        %p167 = pneg %p88
        %p168 = pneg %p85
        %s169 = sand.u32 %s75, 1
        %s170 = scalar_lea.sflag [#allocation4], %s169
        %s171 = sand.u32 %s75, 1
        %s172 = smul.addr %s171, 8
        %s173 = scalar_lea.vmem [#allocation7], %s172
        %v174 = vld [vmem:[%s149] sm:$0xff]
        %v175 = vld [vmem:[#allocation5] sm:$0xff]
        %v176 = vld [vmem:[#allocation5 + $0x8] sm:$0xff]
        %v177 = vld [vmem:[#allocation5 + $0x10] sm:$0xff]
        %v178 = vld [vmem:[#allocation5 + $0x18] sm:$0xff]
        %v179 = vld [vmem:[#allocation5 + $0x20] sm:$0xff]
        %v180 = vld [vmem:[#allocation5 + $0x28] sm:$0xff]
        %v181 = vld [vmem:[#allocation5 + $0x30] sm:$0xff]
        %v182 = vld [vmem:[#allocation5 + $0x38] sm:$0xff]
        %v183 = vld [vmem:[#allocation5 + $0x40] sm:$0xff]
        %v184 = vld [vmem:[#allocation5 + $0x48] sm:$0xff]
        %v185 = vld [vmem:[#allocation5 + $0x50] sm:$0xff]
        %v186 = vld [vmem:[#allocation5 + $0x58] sm:$0xff]
        %vm187 = vcmask 261120
        %v189 = vsel %vm187, %v174, 0
        %191 = vmatprep.subr.mxu0 %v176
        %192 = vmatpush1.msra.mxu0 %v175
        %193 = vmatprep.subr.mxu0 %v179
        %194 = vmatpush1.msra.mxu0 %v178
        %195 = vmatprep.subr.mxu0 %v182
        %196 = vmatpush1.msra.mxu0 %v181
        %197 = vmatprep.subr.mxu0 %v185
        %198 = vmatpush1.msra.mxu0 %v184
        %199 = vmatprep.subr.mxu0 0.0
        %200 = vmatpush1.msra.mxu0 0.0
        %201 = vmatprep.subr.mxu0 0.0
        %202 = vmatpush1.msra.mxu0 0.0
        %203 = vmatprep.subr.mxu0 0.0
        %204 = vmatpush1.msra.mxu0 0.0
        %205 = vmatprep.subr.mxu0 0.0
        %206 = vmatpush1.msra.mxu0 0.0
        %207 = vmatprep.subr.mxu0 0.0
        %208 = vmatpush1.msra.mxu0 0.0
        %209 = vmatprep.subr.mxu0 0.0
        %210 = vmatpush1.msra.mxu0 0.0
        %211 = vmatprep.subr.mxu0 0.0
        %212 = vmatpush1.msra.mxu0 0.0
        %213 = vmatprep.subr.mxu0 0.0
        %214 = vmatpush1.msra.mxu0 0.0
        %215 = vmatprep.subr.mxu0 0.0
        %216 = vmatpush1.msra.mxu0 0.0
        %217 = vmatprep.subr.mxu0 0.0
        %218 = vmatpush1.msra.mxu0 0.0
        %219 = vmatprep.subr.mxu0 0.0
        %220 = vmatpush1.msra.mxu0 0.0
        %221 = vmatprep.subr.mxu0 0.0
        %222 = vmatpush1.msra.mxu0 0.0
        %223 = vmatprep.subr.mxu0 0.0
        %224 = vmatpush1.msra.mxu0 0.0
        %225 = vmatprep.subr.mxu0 0.0
        %226 = vmatpush1.msra.mxu0 0.0
        %227 = vmatprep.subr.mxu0 0.0
        %228 = vmatpush1.msra.mxu0 0.0
        %229 = vmatprep.subr.mxu0 0.0
        %230 = vmatpush1.msra.mxu0 0.0
        %231 = vmatprep.subr.mxu0 0.0
        %232 = vmatpush1.msra.mxu0 0.0
        %233 = vmatprep.subr.mxu0 0.0
        %234 = vmatpush1.msra.mxu0 0.0
        %235 = vmatprep.subr.mxu0 0.0
        %236 = vmatpush1.msra.mxu0 0.0
        %237 = vmatprep.subr.mxu0 0.0
        %238 = vmatpush1.msra.mxu0 0.0
        %239 = vmatprep.subr.mxu0 0.0
        %240 = vmatpush1.msra.mxu0 0.0
        %241 = vmatprep.subr.mxu0 0.0
        %242 = vmatpush1.msra.mxu0 0.0
        %243 = vmatprep.subr.mxu0 0.0
        %244 = vmatpush1.msra.mxu0 0.0
        %245 = vmatprep.subr.mxu0 0.0
        %246 = vmatpush1.msra.mxu0 0.0
        %247 = vmatprep.subr.mxu0 0.0
        %248 = vmatpush1.msra.mxu0 0.0
        %249 = vmatprep.subr.mxu0 0.0
        %250 = vmatpush1.msra.mxu0 0.0
        %251 = vmatprep.subr.mxu0 0.0
        %252 = vmatpush1.msra.mxu0 0.0
        %253 = vmatprep.subr.mxu0 0.0
        %254 = vmatpush1.msra.mxu0 0.0
        %255 = vmatprep.mubr.f32.mxu0 0.0
        %256 = vmatmul.mubr.f32.gmra.mrb[0].mxu0 %v189
        %v257 = vpop.f32.mrb[0].mxu0
        %v258 = vadd.f32 0.0, %v257
        %v259 = vpop.f32.mrb[0].mxu0
        %v260 = vadd.f32 0.0, %v259
        %261 = vdwg.mxu0
        %262 = vmatprep.subr.mxu0 0.0
        %263 = vmatpush1.msra.mxu0 %v177
        %264 = vmatprep.subr.mxu0 0.0
        %265 = vmatpush1.msra.mxu0 %v180
        %266 = vmatprep.subr.mxu0 0.0
        %267 = vmatpush1.msra.mxu0 %v183
        %268 = vmatprep.subr.mxu0 0.0
        %269 = vmatpush1.msra.mxu0 %v186
        %270 = vmatprep.subr.mxu0 0.0
        %271 = vmatpush1.msra.mxu0 0.0
        %272 = vmatprep.subr.mxu0 0.0
        %273 = vmatpush1.msra.mxu0 0.0
        %274 = vmatprep.subr.mxu0 0.0
        %275 = vmatpush1.msra.mxu0 0.0
        %276 = vmatprep.subr.mxu0 0.0
        %277 = vmatpush1.msra.mxu0 0.0
        %278 = vmatprep.subr.mxu0 0.0
        %279 = vmatpush1.msra.mxu0 0.0
        %280 = vmatprep.subr.mxu0 0.0
        %281 = vmatpush1.msra.mxu0 0.0
        %282 = vmatprep.subr.mxu0 0.0
        %283 = vmatpush1.msra.mxu0 0.0
        %284 = vmatprep.subr.mxu0 0.0
        %285 = vmatpush1.msra.mxu0 0.0
        %286 = vmatprep.subr.mxu0 0.0
        %287 = vmatpush1.msra.mxu0 0.0
        %288 = vmatprep.subr.mxu0 0.0
        %289 = vmatpush1.msra.mxu0 0.0
        %290 = vmatprep.subr.mxu0 0.0
        %291 = vmatpush1.msra.mxu0 0.0
        %292 = vmatprep.subr.mxu0 0.0
        %293 = vmatpush1.msra.mxu0 0.0
        %294 = vmatprep.subr.mxu0 0.0
        %295 = vmatpush1.msra.mxu0 0.0
        %296 = vmatprep.subr.mxu0 0.0
        %297 = vmatpush1.msra.mxu0 0.0
        %298 = vmatprep.subr.mxu0 0.0
        %299 = vmatpush1.msra.mxu0 0.0
        %300 = vmatprep.subr.mxu0 0.0
        %301 = vmatpush1.msra.mxu0 0.0
        %302 = vmatprep.subr.mxu0 0.0
        %303 = vmatpush1.msra.mxu0 0.0
        %304 = vmatprep.subr.mxu0 0.0
        %305 = vmatpush1.msra.mxu0 0.0
        %306 = vmatprep.subr.mxu0 0.0
        %307 = vmatpush1.msra.mxu0 0.0
        %308 = vmatprep.subr.mxu0 0.0
        %309 = vmatpush1.msra.mxu0 0.0
        %310 = vmatprep.subr.mxu0 0.0
        %311 = vmatpush1.msra.mxu0 0.0
        %312 = vmatprep.subr.mxu0 0.0
        %313 = vmatpush1.msra.mxu0 0.0
        %314 = vmatprep.subr.mxu0 0.0
        %315 = vmatpush1.msra.mxu0 0.0
        %316 = vmatprep.subr.mxu0 0.0
        %317 = vmatpush1.msra.mxu0 0.0
        %318 = vmatprep.subr.mxu0 0.0
        %319 = vmatpush1.msra.mxu0 0.0
        %320 = vmatprep.subr.mxu0 0.0
        %321 = vmatpush1.msra.mxu0 0.0
        %322 = vmatprep.subr.mxu0 0.0
        %323 = vmatpush1.msra.mxu0 0.0
        %324 = vmatprep.subr.mxu0 0.0
        %325 = vmatpush1.msra.mxu0 0.0
        %326 = vmatprep.mubr.f32.mxu0 0.0
        %327 = vmatmul.mubr.f32.gmra.mrb[0].mxu0 %v189
        %v328 = vpop.f32.mrb[0].mxu0
        %v329 = vadd.f32 0.0, %v328
        %v330 = vpop.f32.mrb[0].mxu0
        %331 = vdwg.mxu0
        %v332 = vmul.f32 %v329, 0.17677669
        %333 = vmatprep.subr.mxu0 0.0
        %334 = vmatpush1.xpose.msra.mxu0 %v260
        %335 = vmatprep.subr.mxu0 0.0
        %336 = vmatpush1.xpose.msra.mxu0 0.0
        %337 = vmatprep.subr.mxu0 0.0
        %338 = vmatpush1.xpose.msra.mxu0 0.0
        %339 = vmatprep.subr.mxu0 0.0
        %340 = vmatpush1.xpose.msra.mxu0 0.0
        %341 = vmatprep.subr.mxu0 0.0
        %342 = vmatpush1.xpose.msra.mxu0 0.0
        %343 = vmatprep.subr.mxu0 0.0
        %344 = vmatpush1.xpose.msra.mxu0 0.0
        %345 = vmatprep.subr.mxu0 0.0
        %346 = vmatpush1.xpose.msra.mxu0 0.0
        %347 = vmatprep.subr.mxu0 0.0
        %348 = vmatpush1.xpose.msra.mxu0 0.0
        %349 = vmatprep.subr.mxu0 0.0
        %350 = vmatpush1.xpose.msra.mxu0 0.0
        %351 = vmatprep.subr.mxu0 0.0
        %352 = vmatpush1.xpose.msra.mxu0 0.0
        %353 = vmatprep.subr.mxu0 0.0
        %354 = vmatpush1.xpose.msra.mxu0 0.0
        %355 = vmatprep.subr.mxu0 0.0
        %356 = vmatpush1.xpose.msra.mxu0 0.0
        %357 = vmatprep.subr.mxu0 0.0
        %358 = vmatpush1.xpose.msra.mxu0 0.0
        %359 = vmatprep.subr.mxu0 0.0
        %360 = vmatpush1.xpose.msra.mxu0 0.0
        %361 = vmatprep.subr.mxu0 0.0
        %362 = vmatpush1.xpose.msra.mxu0 0.0
        %363 = vmatprep.subr.mxu0 0.0
        %364 = vmatpush1.xpose.msra.mxu0 0.0
        %365 = vmatprep.subr.mxu0 0.0
        %366 = vmatpush1.xpose.msra.mxu0 0.0
        %367 = vmatprep.subr.mxu0 0.0
        %368 = vmatpush1.xpose.msra.mxu0 0.0
        %369 = vmatprep.subr.mxu0 0.0
        %370 = vmatpush1.xpose.msra.mxu0 0.0
        %371 = vmatprep.subr.mxu0 0.0
        %372 = vmatpush1.xpose.msra.mxu0 0.0
        %373 = vmatprep.subr.mxu0 0.0
        %374 = vmatpush1.xpose.msra.mxu0 0.0
        %375 = vmatprep.subr.mxu0 0.0
        %376 = vmatpush1.xpose.msra.mxu0 0.0
        %377 = vmatprep.subr.mxu0 0.0
        %378 = vmatpush1.xpose.msra.mxu0 0.0
        %379 = vmatprep.subr.mxu0 0.0
        %380 = vmatpush1.xpose.msra.mxu0 0.0
        %381 = vmatprep.subr.mxu0 0.0
        %382 = vmatpush1.xpose.msra.mxu0 0.0
        %383 = vmatprep.subr.mxu0 0.0
        %384 = vmatpush1.xpose.msra.mxu0 0.0
        %385 = vmatprep.subr.mxu0 0.0
        %386 = vmatpush1.xpose.msra.mxu0 0.0
        %387 = vmatprep.subr.mxu0 0.0
        %388 = vmatpush1.xpose.msra.mxu0 0.0
        %389 = vmatprep.subr.mxu0 0.0
        %390 = vmatpush1.xpose.msra.mxu0 0.0
        %391 = vmatprep.subr.mxu0 0.0
        %392 = vmatpush1.xpose.msra.mxu0 0.0
        %393 = vmatprep.subr.mxu0 0.0
        %394 = vmatpush1.xpose.msra.mxu0 0.0
        %395 = vmatprep.subr.mxu0 0.0
        %396 = vmatpush1.xpose.msra.mxu0 0.0
        %397 = vmatprep.mubr.f32.mxu0 0.0
        %398 = vmatmul.mubr.f32.gmra.mrb[0].mxu0 %v332
        %v399 = vpop.f32.mrb[0].mxu0
        %v400 = vadd.f32 0.0, %v399
        %v401 = vpop.f32.mrb[0].mxu0
        %402 = vdwg.mxu0
        %v403 = vlaneseq
        %v404 = vshrl.u32 %v403, 7
        %v405 = vlaneseq
        %v406 = vand.u32 %v405, 127
        %vm407 = vcmp.le.s32.totalorder %v406, %v404
        %v408 = vsel %vm407, %v400, -inf
        %vm409 = vcmask 64512
        %v410 = vsel %vm409, %v408, -inf
        %411 = vmax.xlane.f32.xlu0 %v410
        %v412 = vpop.xlane.xlu0 %411
        %v413 = vsub.f32 %v408, %v412
        %v414 = vmul.f32 %v413, 1.442695
        %v415 = vpow.pop %v414
        %v416 = vsel %vm409, %v415, 0.0
        %417 = vadd.xlane.f32.xlu0 %v416
        %v418 = vpop.xlane.xlu0 %417
        %v419 = vrcp.pop %v418
        %v420 = vmul.f32 %v415, %v419
        %v422 = vsel %vm409, %v420, 0
        %424 = vmatprep.subr.mxu0 0.0
        %425 = vmatpush1.msra.mxu0 %v258
        %426 = vmatprep.subr.mxu0 0.0
        %427 = vmatpush1.msra.mxu0 0.0
        %428 = vmatprep.subr.mxu0 0.0
        %429 = vmatpush1.msra.mxu0 0.0
        %430 = vmatprep.subr.mxu0 0.0
        %431 = vmatpush1.msra.mxu0 0.0
        %432 = vmatprep.subr.mxu0 0.0
        %433 = vmatpush1.msra.mxu0 0.0
        %434 = vmatprep.subr.mxu0 0.0
        %435 = vmatpush1.msra.mxu0 0.0
        %436 = vmatprep.subr.mxu0 0.0
        %437 = vmatpush1.msra.mxu0 0.0
        %438 = vmatprep.subr.mxu0 0.0
        %439 = vmatpush1.msra.mxu0 0.0
        %440 = vmatprep.subr.mxu0 0.0
        %441 = vmatpush1.msra.mxu0 0.0
        %442 = vmatprep.subr.mxu0 0.0
        %443 = vmatpush1.msra.mxu0 0.0
        %444 = vmatprep.subr.mxu0 0.0
        %445 = vmatpush1.msra.mxu0 0.0
        %446 = vmatprep.subr.mxu0 0.0
        %447 = vmatpush1.msra.mxu0 0.0
        %448 = vmatprep.subr.mxu0 0.0
        %449 = vmatpush1.msra.mxu0 0.0
        %450 = vmatprep.subr.mxu0 0.0
        %451 = vmatpush1.msra.mxu0 0.0
        %452 = vmatprep.subr.mxu0 0.0
        %453 = vmatpush1.msra.mxu0 0.0
        %454 = vmatprep.subr.mxu0 0.0
        %455 = vmatpush1.msra.mxu0 0.0
        %456 = vmatprep.subr.mxu0 0.0
        %457 = vmatpush1.msra.mxu0 0.0
        %458 = vmatprep.subr.mxu0 0.0
        %459 = vmatpush1.msra.mxu0 0.0
        %460 = vmatprep.subr.mxu0 0.0
        %461 = vmatpush1.msra.mxu0 0.0
        %462 = vmatprep.subr.mxu0 0.0
        %463 = vmatpush1.msra.mxu0 0.0
        %464 = vmatprep.subr.mxu0 0.0
        %465 = vmatpush1.msra.mxu0 0.0
        %466 = vmatprep.subr.mxu0 0.0
        %467 = vmatpush1.msra.mxu0 0.0
        %468 = vmatprep.subr.mxu0 0.0
        %469 = vmatpush1.msra.mxu0 0.0
        %470 = vmatprep.subr.mxu0 0.0
        %471 = vmatpush1.msra.mxu0 0.0
        %472 = vmatprep.subr.mxu0 0.0
        %473 = vmatpush1.msra.mxu0 0.0
        %474 = vmatprep.subr.mxu0 0.0
        %475 = vmatpush1.msra.mxu0 0.0
        %476 = vmatprep.subr.mxu0 0.0
        %477 = vmatpush1.msra.mxu0 0.0
        %478 = vmatprep.subr.mxu0 0.0
        %479 = vmatpush1.msra.mxu0 0.0
        %480 = vmatprep.subr.mxu0 0.0
        %481 = vmatpush1.msra.mxu0 0.0
        %482 = vmatprep.subr.mxu0 0.0
        %483 = vmatpush1.msra.mxu0 0.0
        %484 = vmatprep.subr.mxu0 0.0
        %485 = vmatpush1.msra.mxu0 0.0
        %486 = vmatprep.subr.mxu0 0.0
        %487 = vmatpush1.msra.mxu0 0.0
        %488 = vmatprep.mubr.f32.mxu0 0.0
        %489 = vmatmul.mubr.f32.gmra.mrb[0].mxu0 %v422
        %v490 = vpop.f32.mrb[0].mxu0
        %v491 = vadd.f32 0.0, %v490
        %v492 = vpop.f32.mrb[0].mxu0
        %493 = vdwg.mxu0
        %494 = vst [vmem:[%s173] sm:$0xff] %v491
        %s495 = sand.u32 %s75, 1
        %s496 = scalar_lea.sflag [#allocation4], %s495
        %s497 = sand.u32 %s75, 1
        %s498 = smul.addr %s497, 8
        %s499 = scalar_lea.vmem [#allocation7], %s498
        // Predicated region
        $region37: #{tpu_custom_call.1} parent=27 // pred_check
          %p500 = pneg %p85
        $region38: #{tpu_custom_call.1} parent=27 // pred_check_branch
          %502 = sbr.rel (%p500) target = $region40
        $region39: #{tpu_custom_call.1} parent=27 // pred_region
          %s504 = ssub.s32 128, 128
          %505 = vsyncadd %s496, %s504
          %s506 = smul.addr %s20, 128
          %s507 = scalar_lea.hbm %s2, %s506
          %s509 = sshll.u32 %s499, 4
          %s510 = int_to_ptr.vmem [resolvable:$true] %s509
          %512 = dma.vmem_to_hbm [thread:$0]  %s510, 128, %s507, %s496
        $region40: #{tpu_custom_call.1} parent=27 // pred_fallthru
          _
      $region28: #{tpu_custom_call.1} parent=5 // pred_fallthru
        _
      %p513 = scmp.le.s32.totalorder 2, %s15
      // Predicated region
      $region41: #{tpu_custom_call.1} parent=5 // pred_check
        %p514 = pneg %p513
      $region42: #{tpu_custom_call.1} parent=5 // pred_check_branch
        %516 = sbr.rel (%p514) target = $region44
      $region43: #{tpu_custom_call.1} parent=5 // pred_region
        %s517 = ssub.s32 %s15, 2
        // Predicated region
        $region45: #{tpu_custom_call.1} parent=43 // pred_check
          %p518 = pneg %p91
        $region46: #{tpu_custom_call.1} parent=43 // pred_check_branch
          %520 = sbr.rel (%p518) target = $region48
        $region47: #{tpu_custom_call.1} parent=43 // pred_region
          %s521 = sand.u32 %s76, 1
          %s522 = scalar_lea.sflag [#allocation4], %s521
          %s523 = sand.u32 %s76, 1
          %s524 = smul.addr %s523, 8
          %s525 = scalar_lea.vmem [#allocation7], %s524
          %526 = dma.done %s522, 128
        $region48: #{tpu_custom_call.1} parent=43 // pred_fallthru
          _
      $region44: #{tpu_custom_call.1} parent=5 // pred_fallthru
        _
    $region6: #{tpu_custom_call.1} parent=1 // loop_footer
      %s19 = sadd.s32 1, %s15
    $region7: #{tpu_custom_call.1} parent=1 // loop_footer_branch
      %14 = sbr.rel target = $region3
    $region8: #{tpu_custom_call.1} parent=1 // loop_exit
      _
    %527 = vsyncpa [#allocation3], 1
    %s528 = scalar_lea.sflag [#allocation3], 1
    %529 = vsyncpa %s528, 1
    %530 = vsyncpa [#allocation6], 1
    %531 = vsyncpa [#allocation4], 1
    %s532 = scalar_lea.sflag [#allocation4], 1
    %533 = vsyncpa %s532, 1

</llo_original>
